<compile_context>
chip_gen: v6e
topology: v6e:2x2x1
jax: 0.10.0
libtpu: 0.0.40
codegen_flags: <defaults>
</compile_context>

<pallas_src>
import functools
import math

import jax
import jax.numpy as jnp
from jax import lax
from jax.experimental import pallas as pl
from jax.experimental.pallas import tpu as pltpu


_VMEM_LIMIT = 48 * 1024 * 1024  # below v7x's 64 MiB physical, above default scoped limits


def _pick_block(dim, target, align):
    """Largest multiple of `align` dividing `dim` and <= target; else the full dim.

    Full-extent blocks are always legal (exempt from the (8,128) divisibility rule),
    so the fallback keeps tiny test shapes working while large shapes get real tiles.
    """
    if dim <= target or dim % align != 0:
        return dim
    t = (target // align) * align
    while t >= align:
        if dim % t == 0:
            return t
        t -= align
    return dim


# ---------------------------------------------------------------------------
# Fused, tiled linear projections:  y_i = x_i @ w_i.T   (PyTorch weight layout)
# ---------------------------------------------------------------------------

def fused_linear(xs, ws, *, tm_target=256, tn_target=256, tk_target=512):
    """One pallas_call computing n projections.

    xs: length-1 tuple (shared activation — e.g. self-attention QKV) or length-n
        tuple of (M, K) activations.
    ws: length-n tuple of (N, K) weights (nn.Linear layout, bias-free).
    Returns a tuple of n (M, N) outputs.
    """
    n = len(ws)
    share_x = len(xs) == 1
    n_x = 1 if share_x else n
    M, K = xs[0].shape
    N = ws[0].shape[0]
    out_dtype = xs[0].dtype

    tm = _pick_block(M, tm_target, 8)
    tn = _pick_block(N, tn_target, 128)
    tk = _pick_block(K, tk_target, 128)
    grid = (M // tm, N // tn, K // tk)

    x_spec = pl.BlockSpec((tm, tk), lambda i, j, kk: (i, kk))
    w_spec = pl.BlockSpec((tn, tk), lambda i, j, kk: (j, kk))
    o_spec = pl.BlockSpec((tm, tn), lambda i, j, kk: (i, j))

    def kernel(*refs):
        x_refs = refs[:n_x]
        w_refs = refs[n_x:n_x + n]
        o_refs = refs[n_x + n:n_x + 2 * n]
        acc_refs = refs[n_x + 2 * n:]

        @pl.when(pl.program_id(2) == 0)
        def _init():
            for a in acc_refs:
                a[...] = jnp.zeros(a.shape, a.dtype)

        # Contract last dim of x with last dim of w: x @ w.T with NO XLU transpose.
        dn = (((1,), (1,)), ((), ()))
        if share_x:
            x_vals = [x_refs[0][...]] * n
        else:
            x_vals = [r[...] for r in x_refs]
        for idx in range(n):
            acc_refs[idx][...] += lax.dot_general(
                x_vals[idx], w_refs[idx][...], dn,
                preferred_element_type=jnp.float32)

        @pl.when(pl.program_id(2) == pl.num_programs(2) - 1)
        def _finalize():
            for idx in range(n):
                o_refs[idx][...] = acc_refs[idx][...].astype(o_refs[idx].dtype)

    outs = pl.pallas_call(
        kernel,
        out_shape=tuple(jax.ShapeDtypeStruct((M, N), out_dtype) for _ in range(n)),
        grid=grid,
        in_specs=[x_spec] * n_x + [w_spec] * n,
        out_specs=tuple(o_spec for _ in range(n)),
        scratch_shapes=[pltpu.VMEM((tm, tn), jnp.float32) for _ in range(n)],
        compiler_params=pltpu.CompilerParams(
            dimension_semantics=("parallel", "parallel", "arbitrary"),
            vmem_limit_bytes=_VMEM_LIMIT),
    )(*xs, *ws)
    if not isinstance(outs, (tuple, list)):
        outs = (outs,)
    return tuple(outs)


# ---------------------------------------------------------------------------
# Flash-style masked multi-head attention, head-packed (d_model = lane axis)
# ---------------------------------------------------------------------------

def _flash_attn_kernel(q_ref, k_ref, v_ref, mask_ref, o_ref,
                       m_sc, l_sc, acc_sc, *, h, d_k, scale):
    ki = pl.program_id(2)

    @pl.when(ki == 0)
    def _init():
        m_sc[...] = jnp.full(m_sc.shape, -jnp.inf, m_sc.dtype)
        l_sc[...] = jnp.zeros(l_sc.shape, l_sc.dtype)
        acc_sc[...] = jnp.zeros(acc_sc.shape, acc_sc.dtype)

    # 1/sqrt(d_k) folded into the Q tile: O(tq*d_model) instead of O(tq*tk*h).
    q = q_ref[0] * scale          # (tq, h*d_k)
    k = k_ref[0]                  # (tk, h*d_k)
    v = v_ref[0]                  # (tk, h*d_k)
    masked_out = mask_ref[0, 0] == 0   # (tq, tk) from int8 mask
    neg_big = jnp.float32(-1e9)

    dn_qk = (((1,), (1,)), ((), ()))   # q_h @ k_h.T without an XLU transpose
    dn_pv = (((1,), (0,)), ((), ()))   # p   @ v_h

    for i in range(h):                 # heads unrolled: independent MXU work per head
        sl = slice(i * d_k, (i + 1) * d_k)
        s = lax.dot_general(q[:, sl], k[:, sl], dn_qk,
                            preferred_element_type=jnp.float32)       # (tq, tk) f32
        s = jnp.where(masked_out, neg_big, s)

        m_prev = m_sc[i]                                               # (tq, 1)
        m_new = jnp.maximum(m_prev, jnp.max(s, axis=-1, keepdims=True))
        alpha = jnp.exp(m_prev - m_new)
        p = jnp.exp(s - m_new)
        l_sc[i] = alpha * l_sc[i] + jnp.sum(p, axis=-1, keepdims=True)
        acc_sc[i] = alpha * acc_sc[i] + lax.dot_general(
            p.astype(v.dtype), v[:, sl], dn_pv,
            preferred_element_type=jnp.float32)                        # (tq, d_k)
        m_sc[i] = m_new

    @pl.when(ki == pl.num_programs(2) - 1)
    def _finalize():
        outs = []
        for i in range(h):
            # Exact divide (NOT approx reciprocal): the EUP approximation's ~2^-12
            # relative error exceeded the 1e-3 verification tolerance.  One (tq,1)
            # division per head in the epilogue is negligible.
            inv_l = 1.0 / l_sc[i]
            outs.append(acc_sc[i] * inv_l)                # (tq, d_k)
        # Single lane-dense (tq, d_model) store (unmasked vst path).
        o_ref[0] = jnp.concatenate(outs, axis=-1).astype(o_ref.dtype)


def flash_attention(q, k, v, mask_i8, h, *, tq_target=256, tk_target=512):
    """q/k/v: (B, S, h*d_k) head-packed; mask_i8: (B, 1, S, S) int8 (0 = masked)."""
    B, S, d_model = q.shape
    d_k = d_model // h
    tq = _pick_block(S, tq_target, 32)    # 32-aligned keeps the int8 mask block legal
    tk = _pick_block(S, tk_target, 128)
    scale = 1.0 / math.sqrt(d_k)

    kernel = functools.partial(_flash_attn_kernel, h=h, d_k=d_k, scale=scale)
    return pl.pallas_call(
        kernel,
        out_shape=jax.ShapeDtypeStruct((B, S, d_model), q.dtype),
        grid=(B, S // tq, S // tk),
        in_specs=[
            pl.BlockSpec((1, tq, d_model), lambda b, qi, ki: (b, qi, 0)),
            pl.BlockSpec((1, tk, d_model), lambda b, qi, ki: (b, ki, 0)),
            pl.BlockSpec((1, tk, d_model), lambda b, qi, ki: (b, ki, 0)),
            pl.BlockSpec((1, 1, tq, tk), lambda b, qi, ki: (b, 0, qi, ki)),
        ],
        out_specs=pl.BlockSpec((1, tq, d_model), lambda b, qi, ki: (b, qi, 0)),
        scratch_shapes=[
            pltpu.VMEM((h, tq, 1), jnp.float32),     # running max
            pltpu.VMEM((h, tq, 1), jnp.float32),     # running denom
            pltpu.VMEM((h, tq, d_k), jnp.float32),   # running output accumulator
        ],
        compiler_params=pltpu.CompilerParams(
            dimension_semantics=("parallel", "parallel", "arbitrary"),
            vmem_limit_bytes=_VMEM_LIMIT),
    )(q, k, v, mask_i8)


# ---------------------------------------------------------------------------
# Module forward
# ---------------------------------------------------------------------------

def multi_head_attention_block(q, k, v, mask, params, h):
    """Mirrors MultiHeadAttentionBlock.forward (dropout == identity / eval mode)."""
    w_q, w_k, w_v, w_o = params
    B, S, d_model = q.shape
    assert d_model % h == 0

    # Fused QKV projection (single pallas_call).  If q/k/v are literally the same
    # tensor (self-attention), the activation tile is read once and reused 3x.
    if (q is k) and (k is v):
        xs = (q.reshape(B * S, d_model),)
    else:
        xs = (q.reshape(B * S, d_model),
              k.reshape(B * S, d_model),
              v.reshape(B * S, d_model))
    qp, kp, vp = fused_linear(xs, (w_q, w_k, w_v))

    # Head-packed layout (B, S, h*d_k): free reshapes, no transpose(0,2,1,3).
    qp = qp.reshape(B, S, d_model)
    kp = kp.reshape(B, S, d_model)
    vp = vp.reshape(B, S, d_model)

    if mask is None:
        mask_i8 = jnp.ones((B, 1, S, S), dtype=jnp.int8)
    else:
        mask_i8 = jnp.broadcast_to(mask != 0, (B, 1, S, S)).astype(jnp.int8)

    attn = flash_attention(qp, kp, vp, mask_i8, h)         # (B, S, d_model)

    (out,) = fused_linear((attn.reshape(B * S, d_model),), (w_o,))
    return out.reshape(B, S, d_model)


def reference(q, k, v, mask, params, h):
    """Pure-JAX reference of the PyTorch forward, for verification."""
    w_q, w_k, w_v, w_o = params
    B, S, d_model = q.shape
    d_k = d_model // h

    def lin(x, w):
        return jnp.einsum("bsd,od->bso", x, w)

    query = lin(q, w_q).reshape(B, S, h, d_k).transpose(0, 2, 1, 3)
    key = lin(k, w_k).reshape(B, S, h, d_k).transpose(0, 2, 1, 3)
    value = lin(v, w_v).reshape(B, S, h, d_k).transpose(0, 2, 1, 3)

    scores = jnp.einsum("bhqd,bhkd->bhqk", query, key) / math.sqrt(d_k)
    scores = jnp.where(mask == 0, -1e9, scores)
    scores = jax.nn.softmax(scores, axis=-1)
    x = jnp.einsum("bhqk,bhkd->bhqd", scores, value)
    x = x.transpose(0, 2, 1, 3).reshape(B, S, d_model)
    return lin(x, w_o)


# ---------------------------------------------------------------------------

if __name__ == "__main__":
    B, S, d_model, h = 2, 8, 32, 4

    key = jax.random.PRNGKey(0)
    k_q, k_k, k_v, k_wq, k_wk, k_wv, k_wo = jax.random.split(key, 7)

    q = jax.random.normal(k_q, (B, S, d_model), dtype=jnp.float32)
    kk = jax.random.normal(k_k, (B, S, d_model), dtype=jnp.float32)
    v = jax.random.normal(k_v, (B, S, d_model), dtype=jnp.float32)

    # nn.Linear(d_model, d_model, bias=False) default init: U(-1/sqrt(in), 1/sqrt(in))
    bound = 1.0 / math.sqrt(d_model)

    def init_w(kw):
        return jax.random.uniform(
            kw, (d_model, d_model), minval=-bound, maxval=bound, dtype=jnp.float32)

    params = (init_w(k_wq), init_w(k_wk), init_w(k_wv), init_w(k_wo))

    # causal mask, shape (B, 1, S, S), int32 (0 = masked)
    mask = jnp.broadcast_to(
        jnp.tril(jnp.ones((S, S), dtype=jnp.int32))[None, None], (B, 1, S, S))

    out = multi_head_attention_block(q, kk, v, mask, params, h)
    out = jax.block_until_ready(out)

    ref = reference(q, kk, v, mask, params, h)
    assert out.shape == (B, S, d_model), out.shape
    # With the exact softmax divide, the only remaining differences are tiled /
    # online-softmax accumulation reordering (f32): well inside 1e-3.
    assert jnp.allclose(out, ref, atol=1e-3, rtol=1e-3), (
        float(jnp.max(jnp.abs(out - ref))))

    print("KERNEL_OK")
</pallas_src>

<mosaic_0001>
module attributes {stable_mosaic.version = 11 : i64} {
  func.func @kernel(%arg0: i32, %arg1: i32, %arg2: i32, %arg3: memref<16x32xf32, #tpu.memory_space<vmem>>, %arg4: memref<16x32xf32, #tpu.memory_space<vmem>>, %arg5: memref<16x32xf32, #tpu.memory_space<vmem>>, %arg6: memref<32x32xf32, #tpu.memory_space<vmem>>, %arg7: memref<32x32xf32, #tpu.memory_space<vmem>>, %arg8: memref<32x32xf32, #tpu.memory_space<vmem>>, %arg9: memref<16x32xf32, #tpu.memory_space<vmem>>, %arg10: memref<16x32xf32, #tpu.memory_space<vmem>>, %arg11: memref<16x32xf32, #tpu.memory_space<vmem>>, %arg12: memref<16x32xf32, #tpu.memory_space<vmem>>, %arg13: memref<16x32xf32, #tpu.memory_space<vmem>>, %arg14: memref<16x32xf32, #tpu.memory_space<vmem>>) attributes {dimension_semantics = [#tpu.dimension_semantics<parallel>, #tpu.dimension_semantics<parallel>, #tpu.dimension_semantics<arbitrary>], iteration_bounds = array<i64: 1, 1, 1>, scalar_prefetch = 0 : i64, scratch_operands = 3 : i64, tpu.core_type = #tpu.core_type<tc>, window_params = [{transform_indices = @transform_0, window_bounds = array<i64: 16, 32>}, {transform_indices = @transform_1, window_bounds = array<i64: 16, 32>}, {transform_indices = @transform_2, window_bounds = array<i64: 16, 32>}, {transform_indices = @transform_3, window_bounds = array<i64: 32, 32>}, {transform_indices = @transform_4, window_bounds = array<i64: 32, 32>}, {transform_indices = @transform_5, window_bounds = array<i64: 32, 32>}, {transform_indices = @transform_6, window_bounds = array<i64: 16, 32>}, {transform_indices = @transform_7, window_bounds = array<i64: 16, 32>}, {transform_indices = @transform_8, window_bounds = array<i64: 16, 32>}]} {
    %c0_i32 = arith.constant 0 : i32
    %0 = arith.cmpi eq, %arg2, %c0_i32 : i32
    %1 = arith.extui %0 : i1 to i32
    %c0_i32_0 = arith.constant 0 : i32
    %2 = arith.cmpi ne, %1, %c0_i32_0 : i32
    scf.if %2 {
      %cst_28 = arith.constant 0.000000e+00 : f32
      %24 = vector.broadcast %cst_28 : f32 to vector<16x32xf32>
      %c0_29 = arith.constant 0 : index
      %c0_30 = arith.constant 0 : index
      %25 = vector.load %arg12[%c0_29, %c0_30] : memref<16x32xf32, #tpu.memory_space<vmem>>, vector<16x32xf32>
      tpu.vector_store %arg12[%c0_29, %c0_30], %24 {strides = array<i32>} : memref<16x32xf32, #tpu.memory_space<vmem>>, vector<16x32xf32>,
      %cst_31 = arith.constant 0.000000e+00 : f32
      %26 = vector.broadcast %cst_31 : f32 to vector<16x32xf32>
      %c0_32 = arith.constant 0 : index
      %c0_33 = arith.constant 0 : index
      %27 = vector.load %arg13[%c0_32, %c0_33] : memref<16x32xf32, #tpu.memory_space<vmem>>, vector<16x32xf32>
      tpu.vector_store %arg13[%c0_32, %c0_33], %26 {strides = array<i32>} : memref<16x32xf32, #tpu.memory_space<vmem>>, vector<16x32xf32>,
      %cst_34 = arith.constant 0.000000e+00 : f32
      %28 = vector.broadcast %cst_34 : f32 to vector<16x32xf32>
      %c0_35 = arith.constant 0 : index
      %c0_36 = arith.constant 0 : index
      %29 = vector.load %arg14[%c0_35, %c0_36] : memref<16x32xf32, #tpu.memory_space<vmem>>, vector<16x32xf32>
      tpu.vector_store %arg14[%c0_35, %c0_36], %28 {strides = array<i32>} : memref<16x32xf32, #tpu.memory_space<vmem>>, vector<16x32xf32>,
    } else {
    }
    %c0 = arith.constant 0 : index
    %c0_1 = arith.constant 0 : index
    %3 = vector.load %arg3[%c0, %c0_1] : memref<16x32xf32, #tpu.memory_space<vmem>>, vector<16x32xf32>
    %c0_2 = arith.constant 0 : index
    %c0_3 = arith.constant 0 : index
    %4 = vector.load %arg4[%c0_2, %c0_3] : memref<16x32xf32, #tpu.memory_space<vmem>>, vector<16x32xf32>
    %c0_4 = arith.constant 0 : index
    %c0_5 = arith.constant 0 : index
    %5 = vector.load %arg5[%c0_4, %c0_5] : memref<16x32xf32, #tpu.memory_space<vmem>>, vector<16x32xf32>
    %c0_6 = arith.constant 0 : index
    %c0_7 = arith.constant 0 : index
    %6 = vector.load %arg12[%c0_6, %c0_7] : memref<16x32xf32, #tpu.memory_space<vmem>>, vector<16x32xf32>
    %c0_8 = arith.constant 0 : index
    %c0_9 = arith.constant 0 : index
    %7 = vector.load %arg6[%c0_8, %c0_9] : memref<32x32xf32, #tpu.memory_space<vmem>>, vector<32x32xf32>
    %cst = arith.constant dense<0.000000e+00> : vector<16x32xf32>
    %8 = tpu.matmul %3, %7, %cst {dimension_numbers = #tpu.dot_dimension_numbers<[1], [1], [0], [0], [0, 0, 1, 0], [], []>} : vector<16x32xf32>, vector<32x32xf32>, vector<16x32xf32> -> vector<16x32xf32>
    %9 = arith.addf %6, %8 : vector<16x32xf32>
    %c0_10 = arith.constant 0 : index
    %c0_11 = arith.constant 0 : index
    %10 = vector.load %arg12[%c0_10, %c0_11] : memref<16x32xf32, #tpu.memory_space<vmem>>, vector<16x32xf32>
    tpu.vector_store %arg12[%c0_10, %c0_11], %9 {strides = array<i32>} : memref<16x32xf32, #tpu.memory_space<vmem>>, vector<16x32xf32>,
    %c0_12 = arith.constant 0 : index
    %c0_13 = arith.constant 0 : index
    %11 = vector.load %arg13[%c0_12, %c0_13] : memref<16x32xf32, #tpu.memory_space<vmem>>, vector<16x32xf32>
    %c0_14 = arith.constant 0 : index
    %c0_15 = arith.constant 0 : index
    %12 = vector.load %arg7[%c0_14, %c0_15] : memref<32x32xf32, #tpu.memory_space<vmem>>, vector<32x32xf32>
    %cst_16 = arith.constant dense<0.000000e+00> : vector<16x32xf32>
    %13 = tpu.matmul %4, %12, %cst_16 {dimension_numbers = #tpu.dot_dimension_numbers<[1], [1], [0], [0], [0, 0, 1, 0], [], []>} : vector<16x32xf32>, vector<32x32xf32>, vector<16x32xf32> -> vector<16x32xf32>
    %14 = arith.addf %11, %13 : vector<16x32xf32>
    %c0_17 = arith.constant 0 : index
    %c0_18 = arith.constant 0 : index
    %15 = vector.load %arg13[%c0_17, %c0_18] : memref<16x32xf32, #tpu.memory_space<vmem>>, vector<16x32xf32>
    tpu.vector_store %arg13[%c0_17, %c0_18], %14 {strides = array<i32>} : memref<16x32xf32, #tpu.memory_space<vmem>>, vector<16x32xf32>,
    %c0_19 = arith.constant 0 : index
    %c0_20 = arith.constant 0 : index
    %16 = vector.load %arg14[%c0_19, %c0_20] : memref<16x32xf32, #tpu.memory_space<vmem>>, vector<16x32xf32>
    %c0_21 = arith.constant 0 : index
    %c0_22 = arith.constant 0 : index
    %17 = vector.load %arg8[%c0_21, %c0_22] : memref<32x32xf32, #tpu.memory_space<vmem>>, vector<32x32xf32>
    %cst_23 = arith.constant dense<0.000000e+00> : vector<16x32xf32>
    %18 = tpu.matmul %5, %17, %cst_23 {dimension_numbers = #tpu.dot_dimension_numbers<[1], [1], [0], [0], [0, 0, 1, 0], [], []>} : vector<16x32xf32>, vector<32x32xf32>, vector<16x32xf32> -> vector<16x32xf32>
    %19 = arith.addf %16, %18 : vector<16x32xf32>
    %c0_24 = arith.constant 0 : index
    %c0_25 = arith.constant 0 : index
    %20 = vector.load %arg14[%c0_24, %c0_25] : memref<16x32xf32, #tpu.memory_space<vmem>>, vector<16x32xf32>
    tpu.vector_store %arg14[%c0_24, %c0_25], %19 {strides = array<i32>} : memref<16x32xf32, #tpu.memory_space<vmem>>, vector<16x32xf32>,
    %c0_i32_26 = arith.constant 0 : i32
    %21 = arith.cmpi eq, %arg2, %c0_i32_26 : i32
    %22 = arith.extui %21 : i1 to i32
    %c0_i32_27 = arith.constant 0 : i32
    %23 = arith.cmpi ne, %22, %c0_i32_27 : i32
    scf.if %23 {
      %c0_28 = arith.constant 0 : index
      %c0_29 = arith.constant 0 : index
      %24 = vector.load %arg12[%c0_28, %c0_29] : memref<16x32xf32, #tpu.memory_space<vmem>>, vector<16x32xf32>
      %c0_30 = arith.constant 0 : index
      %c0_31 = arith.constant 0 : index
      %25 = vector.load %arg9[%c0_30, %c0_31] : memref<16x32xf32, #tpu.memory_space<vmem>>, vector<16x32xf32>
      tpu.vector_store %arg9[%c0_30, %c0_31], %24 {strides = array<i32>} : memref<16x32xf32, #tpu.memory_space<vmem>>, vector<16x32xf32>,
      %c0_32 = arith.constant 0 : index
      %c0_33 = arith.constant 0 : index
      %26 = vector.load %arg13[%c0_32, %c0_33] : memref<16x32xf32, #tpu.memory_space<vmem>>, vector<16x32xf32>
      %c0_34 = arith.constant 0 : index
      %c0_35 = arith.constant 0 : index
      %27 = vector.load %arg10[%c0_34, %c0_35] : memref<16x32xf32, #tpu.memory_space<vmem>>, vector<16x32xf32>
      tpu.vector_store %arg10[%c0_34, %c0_35], %26 {strides = array<i32>} : memref<16x32xf32, #tpu.memory_space<vmem>>, vector<16x32xf32>,
      %c0_36 = arith.constant 0 : index
      %c0_37 = arith.constant 0 : index
      %28 = vector.load %arg14[%c0_36, %c0_37] : memref<16x32xf32, #tpu.memory_space<vmem>>, vector<16x32xf32>
      %c0_38 = arith.constant 0 : index
      %c0_39 = arith.constant 0 : index
      %29 = vector.load %arg11[%c0_38, %c0_39] : memref<16x32xf32, #tpu.memory_space<vmem>>, vector<16x32xf32>
      tpu.vector_store %arg11[%c0_38, %c0_39], %28 {strides = array<i32>} : memref<16x32xf32, #tpu.memory_space<vmem>>, vector<16x32xf32>,
    } else {
    }
    return
  }
  func.func @transform_0(%arg0: i32, %arg1: i32, %arg2: i32) -> (i32, i32) {
    %c0_i32 = arith.constant 0 : i32
    return %arg0, %arg2 : i32, i32
  }
  func.func @transform_1(%arg0: i32, %arg1: i32, %arg2: i32) -> (i32, i32) {
    %c0_i32 = arith.constant 0 : i32
    return %arg0, %arg2 : i32, i32
  }
  func.func @transform_2(%arg0: i32, %arg1: i32, %arg2: i32) -> (i32, i32) {
    %c0_i32 = arith.constant 0 : i32
    return %arg0, %arg2 : i32, i32
  }
  func.func @transform_3(%arg0: i32, %arg1: i32, %arg2: i32) -> (i32, i32) {
    %c0_i32 = arith.constant 0 : i32
    return %arg1, %arg2 : i32, i32
  }
  func.func @transform_4(%arg0: i32, %arg1: i32, %arg2: i32) -> (i32, i32) {
    %c0_i32 = arith.constant 0 : i32
    return %arg1, %arg2 : i32, i32
  }
  func.func @transform_5(%arg0: i32, %arg1: i32, %arg2: i32) -> (i32, i32) {
    %c0_i32 = arith.constant 0 : i32
    return %arg1, %arg2 : i32, i32
  }
  func.func @transform_6(%arg0: i32, %arg1: i32, %arg2: i32) -> (i32, i32) {
    %c0_i32 = arith.constant 0 : i32
    return %arg0, %arg1 : i32, i32
  }
  func.func @transform_7(%arg0: i32, %arg1: i32, %arg2: i32) -> (i32, i32) {
    %c0_i32 = arith.constant 0 : i32
    return %arg0, %arg1 : i32, i32
  }
  func.func @transform_8(%arg0: i32, %arg1: i32, %arg2: i32) -> (i32, i32) {
    %c0_i32 = arith.constant 0 : i32
    return %arg0, %arg1 : i32, i32
  }
}

</mosaic_0001>

<llo_original>
// kernel: tpu_custom_call.1
$region0: #{tpu_custom_call.1}
  #allocation0 [shape = 'u32[]', space=smem, size = 0x4, offset = 0x4, fixed_abs, tag = 'smem constant byte address 0x4 - core index']
  #allocation1 [shape = 'u32[144,128]{1,0:T(1,128)}', space=vmem, size = 0x12000, scoped, tag = 'internal scratch']
  #allocation2 [shape = 'f32[16,32]{1,0:T(8,128)}', space=vmem, size = 0x2000, scoped, tag = 'scratch operand']
  #allocation3 [shape = 'f32[16,32]{1,0:T(8,128)}', space=vmem, size = 0x2000, scoped, tag = 'scratch operand']
  #allocation4 [shape = 'f32[16,32]{1,0:T(8,128)}', space=vmem, size = 0x2000, scoped, tag = 'scratch operand']
  %s0 = inlined_call_operand.hbm [shape: f32[16,32], index: 0, kind: input, shape index: {}]
  %s1 = inlined_call_operand.hbm [shape: f32[16,32], index: 1, kind: input, shape index: {}]
  %s2 = inlined_call_operand.hbm [shape: f32[16,32], index: 2, kind: input, shape index: {}]
  %s3 = inlined_call_operand.hbm [shape: f32[32,32], index: 3, kind: input, shape index: {}]
  %s4 = inlined_call_operand.hbm [shape: f32[32,32], index: 4, kind: input, shape index: {}]
  %s5 = inlined_call_operand.hbm [shape: f32[32,32], index: 5, kind: input, shape index: {}]
  %s6 = inlined_call_operand.hbm [shape: f32[16,32], index: 6, kind: output, shape index: {0}]
  %s7 = inlined_call_operand.hbm [shape: f32[16,32], index: 7, kind: output, shape index: {1}]
  %s8 = inlined_call_operand.hbm [shape: f32[16,32], index: 8, kind: output, shape index: {2}]
  %9 = xla_tuple %s6, %s7, %s8
  %s10 = sld [smem:[#allocation0]]
  $region82: #{tpu_custom_call.1} parent=0
    _
  %s12 = ssub.s32 1, %s10
  %s13 = scalar_select 0, %s12, %s10
  $region1: #{tpu_custom_call.1} parent=0
    #allocation5 [shape = 'u8[8192]{0}', space=vmem, size = 0x2000, scoped, tag = 'input window, operand 0, single buffered']
    #allocation6 [shape = 's32[1]{0}', space=sflag, size = 0x4, scoped, tag = 'scoped memory for tpu_custom_call.1']
    #allocation7 [shape = 's32[1]{0}', space=sflag, size = 0x4, scoped, tag = 'scoped memory for tpu_custom_call.1']
    #allocation8 [shape = 'u8[8192]{0}', space=vmem, size = 0x2000, scoped, tag = 'input window, operand 1, single buffered']
    #allocation9 [shape = 's32[1]{0}', space=sflag, size = 0x4, scoped, tag = 'scoped memory for tpu_custom_call.1']
    #allocation10 [shape = 'u8[8192]{0}', space=vmem, size = 0x2000, scoped, tag = 'input window, operand 2, single buffered']
    #allocation11 [shape = 'u8[16384]{0}', space=vmem, size = 0x4000, scoped, tag = 'input window, operand 3, single buffered']
    #allocation12 [shape = 's32[1]{0}', space=sflag, size = 0x4, scoped, tag = 'scoped memory for tpu_custom_call.1']
    #allocation13 [shape = 'u8[16384]{0}', space=vmem, size = 0x4000, scoped, tag = 'input window, operand 4, single buffered']
    #allocation14 [shape = 'u8[16384]{0}', space=vmem, size = 0x4000, scoped, tag = 'input window, operand 5, single buffered']
    #allocation15 [shape = 's32[1]{0}', space=sflag, size = 0x4, scoped, tag = 'scoped memory for tpu_custom_call.1']
    #allocation16 [shape = 'u8[8192]{0}', space=vmem, size = 0x2000, scoped, tag = 'output window, operand 0, single buffered']
    #allocation17 [shape = 'u8[8192]{0}', space=vmem, size = 0x2000, scoped, tag = 'output window, operand 1, single buffered']
    #allocation18 [shape = 's32[1]{0}', space=sflag, size = 0x4, scoped, tag = 'scoped memory for tpu_custom_call.1']
    #allocation19 [shape = 'u8[8192]{0}', space=vmem, size = 0x2000, scoped, tag = 'output window, operand 2, single buffered']
    %14 = vsyncpa [#allocation6], 0
    %15 = vsyncpa [#allocation9], 0
    %16 = vsyncpa [#allocation12], 0
    %17 = vsyncpa [#allocation15], 0
    %18 = vsyncpa [#allocation7], 0
    %19 = vsyncpa [#allocation18], 0
    // Predicated region
    $region2: #{tpu_custom_call.1} parent=1 // pred_check
      _
    $region3: #{tpu_custom_call.1} parent=1 // pred_check_branch
      %21 = sbr.rel (0) target = $region5
    $region4: #{tpu_custom_call.1} parent=1 // pred_region
      %s23 = ssub.s32 256, 256
      %24 = vsyncadd [#allocation6], %s23
      %s25 = sshll.u32 [#allocation5], 4
      %s26 = int_to_ptr.vmem [resolvable:$true] %s25
      %31 = dma.hbm_to_vmem [thread:$0]  %s0, 256, %s26, [#allocation6], 128, 128, 8
    $region5: #{tpu_custom_call.1} parent=1 // pred_fallthru
      _
    // Predicated region
    $region6: #{tpu_custom_call.1} parent=1 // pred_check
      _
    $region7: #{tpu_custom_call.1} parent=1 // pred_check_branch
      %33 = sbr.rel (0) target = $region9
    $region8: #{tpu_custom_call.1} parent=1 // pred_region
      %s35 = ssub.s32 256, 256
      %36 = vsyncadd [#allocation9], %s35
      %s37 = sshll.u32 [#allocation8], 4
      %s38 = int_to_ptr.vmem [resolvable:$true] %s37
      %43 = dma.hbm_to_vmem [thread:$0]  %s1, 256, %s38, [#allocation9], 128, 128, 8
    $region9: #{tpu_custom_call.1} parent=1 // pred_fallthru
      _
    // Predicated region
    $region10: #{tpu_custom_call.1} parent=1 // pred_check
      _
    $region11: #{tpu_custom_call.1} parent=1 // pred_check_branch
      %45 = sbr.rel (0) target = $region13
    $region12: #{tpu_custom_call.1} parent=1 // pred_region
      %s47 = ssub.s32 256, 256
      %48 = vsyncadd [#allocation9], %s47
      %s49 = sshll.u32 [#allocation10], 4
      %s50 = int_to_ptr.vmem [resolvable:$true] %s49
      %55 = dma.hbm_to_vmem [thread:$0]  %s2, 256, %s50, [#allocation9], 128, 128, 8
    $region13: #{tpu_custom_call.1} parent=1 // pred_fallthru
      _
    // Predicated region
    $region14: #{tpu_custom_call.1} parent=1 // pred_check
      _
    $region15: #{tpu_custom_call.1} parent=1 // pred_check_branch
      %57 = sbr.rel (0) target = $region17
    $region16: #{tpu_custom_call.1} parent=1 // pred_region
      %s59 = ssub.s32 512, 512
      %60 = vsyncadd [#allocation12], %s59
      %s61 = sshll.u32 [#allocation11], 4
      %s62 = int_to_ptr.vmem [resolvable:$true] %s61
      %67 = dma.hbm_to_vmem [thread:$0]  %s3, 512, %s62, [#allocation12], 128, 128, 8
    $region17: #{tpu_custom_call.1} parent=1 // pred_fallthru
      _
    // Predicated region
    $region18: #{tpu_custom_call.1} parent=1 // pred_check
      _
    $region19: #{tpu_custom_call.1} parent=1 // pred_check_branch
      %69 = sbr.rel (0) target = $region21
    $region20: #{tpu_custom_call.1} parent=1 // pred_region
      %s71 = ssub.s32 512, 512
      %72 = vsyncadd [#allocation12], %s71
      %s73 = sshll.u32 [#allocation13], 4
      %s74 = int_to_ptr.vmem [resolvable:$true] %s73
      %79 = dma.hbm_to_vmem [thread:$0]  %s4, 512, %s74, [#allocation12], 128, 128, 8
    $region21: #{tpu_custom_call.1} parent=1 // pred_fallthru
      _
    // Predicated region
    $region22: #{tpu_custom_call.1} parent=1 // pred_check
      _
    $region23: #{tpu_custom_call.1} parent=1 // pred_check_branch
      %81 = sbr.rel (0) target = $region25
    $region24: #{tpu_custom_call.1} parent=1 // pred_region
      %s83 = ssub.s32 512, 512
      %84 = vsyncadd [#allocation15], %s83
      %s85 = sshll.u32 [#allocation14], 4
      %s86 = int_to_ptr.vmem [resolvable:$true] %s85
      %91 = dma.hbm_to_vmem [thread:$0]  %s5, 512, %s86, [#allocation15], 128, 128, 8
    $region25: #{tpu_custom_call.1} parent=1 // pred_fallthru
      _
    // Predicated region
    $region26: #{tpu_custom_call.1} parent=1 // pred_check
      _
    $region27: #{tpu_custom_call.1} parent=1 // pred_check_branch
      %93 = sbr.rel (0) target = $region29
    $region28: #{tpu_custom_call.1} parent=1 // pred_region
      %94 = dma.done [#allocation6], 256
    $region29: #{tpu_custom_call.1} parent=1 // pred_fallthru
      _
    // Predicated region
    $region30: #{tpu_custom_call.1} parent=1 // pred_check
      _
    $region31: #{tpu_custom_call.1} parent=1 // pred_check_branch
      %96 = sbr.rel (0) target = $region33
    $region32: #{tpu_custom_call.1} parent=1 // pred_region
      %97 = dma.done [#allocation9], 256
    $region33: #{tpu_custom_call.1} parent=1 // pred_fallthru
      _
    // Predicated region
    $region34: #{tpu_custom_call.1} parent=1 // pred_check
      _
    $region35: #{tpu_custom_call.1} parent=1 // pred_check_branch
      %99 = sbr.rel (0) target = $region37
    $region36: #{tpu_custom_call.1} parent=1 // pred_region
      %100 = dma.done [#allocation9], 256
    $region37: #{tpu_custom_call.1} parent=1 // pred_fallthru
      _
    // Predicated region
    $region38: #{tpu_custom_call.1} parent=1 // pred_check
      _
    $region39: #{tpu_custom_call.1} parent=1 // pred_check_branch
      %102 = sbr.rel (0) target = $region41
    $region40: #{tpu_custom_call.1} parent=1 // pred_region
      %103 = dma.done [#allocation12], 512
    $region41: #{tpu_custom_call.1} parent=1 // pred_fallthru
      _
    // Predicated region
    $region42: #{tpu_custom_call.1} parent=1 // pred_check
      _
    $region43: #{tpu_custom_call.1} parent=1 // pred_check_branch
      %105 = sbr.rel (0) target = $region45
    $region44: #{tpu_custom_call.1} parent=1 // pred_region
      %106 = dma.done [#allocation12], 512
    $region45: #{tpu_custom_call.1} parent=1 // pred_fallthru
      _
    // Predicated region
    $region46: #{tpu_custom_call.1} parent=1 // pred_check
      _
    $region47: #{tpu_custom_call.1} parent=1 // pred_check_branch
      %108 = sbr.rel (0) target = $region49
    $region48: #{tpu_custom_call.1} parent=1 // pred_region
      %109 = dma.done [#allocation15], 512
    $region49: #{tpu_custom_call.1} parent=1 // pred_fallthru
      _
    %p110 = scmp.eq.s32.totalorder 0, 0
    // Predicated region
    $region50: #{tpu_custom_call.1} parent=1 // pred_check
      %p111 = pneg %p110
    $region51: #{tpu_custom_call.1} parent=1 // pred_check_branch
      %113 = sbr.rel (%p111) target = $region53
    $region52: #{tpu_custom_call.1} parent=1 // pred_region
      %vm114 = vcmask 261120
      %115 = vst.msk [vmem:[#allocation2] sm:$0xff] %vm114, 0.0
      %116 = vst.msk [vmem:[#allocation2 + $0x8] sm:$0xff] %vm114, 0.0
      %117 = vst.msk [vmem:[#allocation3] sm:$0xff] %vm114, 0.0
      %118 = vst.msk [vmem:[#allocation3 + $0x8] sm:$0xff] %vm114, 0.0
      %119 = vst.msk [vmem:[#allocation4] sm:$0xff] %vm114, 0.0
      %120 = vst.msk [vmem:[#allocation4 + $0x8] sm:$0xff] %vm114, 0.0
    $region53: #{tpu_custom_call.1} parent=1 // pred_fallthru
      _
    %v121 = vld [vmem:[#allocation5] sm:$0xff]
    %v122 = vld [vmem:[#allocation5 + $0x8] sm:$0xff]
    %v123 = vld [vmem:[#allocation8] sm:$0xff]
    %v124 = vld [vmem:[#allocation8 + $0x8] sm:$0xff]
    %v125 = vld [vmem:[#allocation10] sm:$0xff]
    %v126 = vld [vmem:[#allocation10 + $0x8] sm:$0xff]
    %v127 = vld [vmem:[#allocation2] sm:$0xff]
    %v128 = vld [vmem:[#allocation2 + $0x8] sm:$0xff]
    %v129 = vld [vmem:[#allocation11] sm:$0xff]
    %v130 = vld [vmem:[#allocation11 + $0x8] sm:$0xff]
    %v131 = vld [vmem:[#allocation11 + $0x10] sm:$0xff]
    %v132 = vld [vmem:[#allocation11 + $0x18] sm:$0xff]
    %vm133 = vcmask 261120
    %v135 = vsel %vm133, %v121, 0
    %v138 = vsel %vm133, %v122, 0
    %v141 = vsel %vm133, %v129, 0
    %v144 = vsel %vm133, %v130, 0
    %v147 = vsel %vm133, %v131, 0
    %v150 = vsel %vm133, %v132, 0
    %152 = vmatprep.subr.mxu0 0.0
    %153 = vmatpush1.xpose.msra.mxu0 0.0
    %154 = vmatprep.subr.mxu0 0.0
    %155 = vmatpush1.xpose.msra.mxu0 0.0
    %156 = vmatprep.subr.mxu0 0.0
    %157 = vmatpush1.xpose.msra.mxu0 0.0
    %158 = vmatprep.subr.mxu0 0.0
    %159 = vmatpush1.xpose.msra.mxu0 0.0
    %160 = vmatprep.subr.mxu0 0.0
    %161 = vmatpush1.xpose.msra.mxu0 0.0
    %162 = vmatprep.subr.mxu0 0.0
    %163 = vmatpush1.xpose.msra.mxu0 0.0
    %164 = vmatprep.subr.mxu0 0.0
    %165 = vmatpush1.xpose.msra.mxu0 0.0
    %166 = vmatprep.subr.mxu0 0.0
    %167 = vmatpush1.xpose.msra.mxu0 0.0
    %168 = vmatprep.subr.mxu0 0.0
    %169 = vmatpush1.xpose.msra.mxu0 0.0
    %170 = vmatprep.subr.mxu0 0.0
    %171 = vmatpush1.xpose.msra.mxu0 0.0
    %172 = vmatprep.subr.mxu0 0.0
    %173 = vmatpush1.xpose.msra.mxu0 0.0
    %174 = vmatprep.subr.mxu0 0.0
    %175 = vmatpush1.xpose.msra.mxu0 0.0
    %176 = vmatprep.subr.mxu0 0.0
    %177 = vmatpush1.xpose.msra.mxu0 %v150
    %178 = vmatprep.subr.mxu0 0.0
    %179 = vmatpush1.xpose.msra.mxu0 %v147
    %180 = vmatprep.subr.mxu0 0.0
    %181 = vmatpush1.xpose.msra.mxu0 %v144
    %182 = vmatprep.subr.mxu0 0.0
    %183 = vmatpush1.xpose.msra.mxu0 %v141
    %184 = vmatprep.subr.mxu0 0.0
    %185 = vmatpush2.xpose.msra.mxu0 0.0
    %186 = vmatprep.subr.mxu0 0.0
    %187 = vmatpush2.xpose.msra.mxu0 0.0
    %188 = vmatprep.subr.mxu0 0.0
    %189 = vmatpush2.xpose.msra.mxu0 0.0
    %190 = vmatprep.subr.mxu0 0.0
    %191 = vmatpush2.xpose.msra.mxu0 0.0
    %192 = vmatprep.subr.mxu0 0.0
    %193 = vmatpush2.xpose.msra.mxu0 0.0
    %194 = vmatprep.subr.mxu0 0.0
    %195 = vmatpush2.xpose.msra.mxu0 0.0
    %196 = vmatprep.subr.mxu0 0.0
    %197 = vmatpush2.xpose.msra.mxu0 0.0
    %198 = vmatprep.subr.mxu0 0.0
    %199 = vmatpush2.xpose.msra.mxu0 0.0
    %200 = vmatprep.subr.mxu0 0.0
    %201 = vmatpush2.xpose.msra.mxu0 0.0
    %202 = vmatprep.subr.mxu0 0.0
    %203 = vmatpush2.xpose.msra.mxu0 0.0
    %204 = vmatprep.subr.mxu0 0.0
    %205 = vmatpush2.xpose.msra.mxu0 0.0
    %206 = vmatprep.subr.mxu0 0.0
    %207 = vmatpush2.xpose.msra.mxu0 0.0
    %208 = vmatprep.subr.mxu0 0.0
    %209 = vmatpush2.xpose.msra.mxu0 0.0
    %210 = vmatprep.subr.mxu0 0.0
    %211 = vmatpush2.xpose.msra.mxu0 0.0
    %212 = vmatprep.subr.mxu0 0.0
    %213 = vmatpush2.xpose.msra.mxu0 0.0
    %214 = vmatprep.subr.mxu0 0.0
    %215 = vmatpush2.xpose.msra.mxu0 0.0
    %216 = vmatprep.mubr.f32.mxu0 0.0
    %217 = vmatmul.mubr.f32.gmra.mxu0 %v135
    %v218 = vpop.f32.mrf.mxu0
    %v219 = vadd.f32 0.0, %v218
    %v220 = vpop.f32.mrf.mxu0
    %221 = vmatprep.mubr.f32.mxu0 0.0
    %222 = vmatmul.mubr.f32.gmra.mxu0 %v138
    %v223 = vpop.f32.mrf.mxu0
    %v224 = vadd.f32 0.0, %v223
    %v225 = vpop.f32.mrf.mxu0
    %226 = vdwg.mxu0
    %v227 = vadd.f32 %v127, %v219
    %v228 = vadd.f32 %v128, %v224
    %229 = vst.msk [vmem:[#allocation2] sm:$0xff] %vm133, %v227
    %230 = vst.msk [vmem:[#allocation2 + $0x8] sm:$0xff] %vm133, %v228
    %v231 = vld [vmem:[#allocation3] sm:$0xff]
    %v232 = vld [vmem:[#allocation3 + $0x8] sm:$0xff]
    %v233 = vld [vmem:[#allocation13] sm:$0xff]
    %v234 = vld [vmem:[#allocation13 + $0x8] sm:$0xff]
    %v235 = vld [vmem:[#allocation13 + $0x10] sm:$0xff]
    %v236 = vld [vmem:[#allocation13 + $0x18] sm:$0xff]
    %v238 = vsel %vm133, %v123, 0
    %v241 = vsel %vm133, %v124, 0
    %v244 = vsel %vm133, %v233, 0
    %v247 = vsel %vm133, %v234, 0
    %v250 = vsel %vm133, %v235, 0
    %v253 = vsel %vm133, %v236, 0
    %255 = vmatprep.subr.mxu0 0.0
    %256 = vmatpush1.xpose.msra.mxu0 0.0
    %257 = vmatprep.subr.mxu0 0.0
    %258 = vmatpush1.xpose.msra.mxu0 0.0
    %259 = vmatprep.subr.mxu0 0.0
    %260 = vmatpush1.xpose.msra.mxu0 0.0
    %261 = vmatprep.subr.mxu0 0.0
    %262 = vmatpush1.xpose.msra.mxu0 0.0
    %263 = vmatprep.subr.mxu0 0.0
    %264 = vmatpush1.xpose.msra.mxu0 0.0
    %265 = vmatprep.subr.mxu0 0.0
    %266 = vmatpush1.xpose.msra.mxu0 0.0
    %267 = vmatprep.subr.mxu0 0.0
    %268 = vmatpush1.xpose.msra.mxu0 0.0
    %269 = vmatprep.subr.mxu0 0.0
    %270 = vmatpush1.xpose.msra.mxu0 0.0
    %271 = vmatprep.subr.mxu0 0.0
    %272 = vmatpush1.xpose.msra.mxu0 0.0
    %273 = vmatprep.subr.mxu0 0.0
    %274 = vmatpush1.xpose.msra.mxu0 0.0
    %275 = vmatprep.subr.mxu0 0.0
    %276 = vmatpush1.xpose.msra.mxu0 0.0
    %277 = vmatprep.subr.mxu0 0.0
    %278 = vmatpush1.xpose.msra.mxu0 0.0
    %279 = vmatprep.subr.mxu0 0.0
    %280 = vmatpush1.xpose.msra.mxu0 %v253
    %281 = vmatprep.subr.mxu0 0.0
    %282 = vmatpush1.xpose.msra.mxu0 %v250
    %283 = vmatprep.subr.mxu0 0.0
    %284 = vmatpush1.xpose.msra.mxu0 %v247
    %285 = vmatprep.subr.mxu0 0.0
    %286 = vmatpush1.xpose.msra.mxu0 %v244
    %287 = vmatprep.subr.mxu0 0.0
    %288 = vmatpush2.xpose.msra.mxu0 0.0
    %289 = vmatprep.subr.mxu0 0.0
    %290 = vmatpush2.xpose.msra.mxu0 0.0
    %291 = vmatprep.subr.mxu0 0.0
    %292 = vmatpush2.xpose.msra.mxu0 0.0
    %293 = vmatprep.subr.mxu0 0.0
    %294 = vmatpush2.xpose.msra.mxu0 0.0
    %295 = vmatprep.subr.mxu0 0.0
    %296 = vmatpush2.xpose.msra.mxu0 0.0
    %297 = vmatprep.subr.mxu0 0.0
    %298 = vmatpush2.xpose.msra.mxu0 0.0
    %299 = vmatprep.subr.mxu0 0.0
    %300 = vmatpush2.xpose.msra.mxu0 0.0
    %301 = vmatprep.subr.mxu0 0.0
    %302 = vmatpush2.xpose.msra.mxu0 0.0
    %303 = vmatprep.subr.mxu0 0.0
    %304 = vmatpush2.xpose.msra.mxu0 0.0
    %305 = vmatprep.subr.mxu0 0.0
    %306 = vmatpush2.xpose.msra.mxu0 0.0
    %307 = vmatprep.subr.mxu0 0.0
    %308 = vmatpush2.xpose.msra.mxu0 0.0
    %309 = vmatprep.subr.mxu0 0.0
    %310 = vmatpush2.xpose.msra.mxu0 0.0
    %311 = vmatprep.subr.mxu0 0.0
    %312 = vmatpush2.xpose.msra.mxu0 0.0
    %313 = vmatprep.subr.mxu0 0.0
    %314 = vmatpush2.xpose.msra.mxu0 0.0
    %315 = vmatprep.subr.mxu0 0.0
    %316 = vmatpush2.xpose.msra.mxu0 0.0
    %317 = vmatprep.subr.mxu0 0.0
    %318 = vmatpush2.xpose.msra.mxu0 0.0
    %319 = vmatprep.mubr.f32.mxu0 0.0
    %320 = vmatmul.mubr.f32.gmra.mxu0 %v238
    %v321 = vpop.f32.mrf.mxu0
    %v322 = vadd.f32 0.0, %v321
    %v323 = vpop.f32.mrf.mxu0
    %324 = vmatprep.mubr.f32.mxu0 0.0
    %325 = vmatmul.mubr.f32.gmra.mxu0 %v241
    %v326 = vpop.f32.mrf.mxu0
    %v327 = vadd.f32 0.0, %v326
    %v328 = vpop.f32.mrf.mxu0
    %329 = vdwg.mxu0
    %v330 = vadd.f32 %v231, %v322
    %v331 = vadd.f32 %v232, %v327
    %332 = vst.msk [vmem:[#allocation3] sm:$0xff] %vm133, %v330
    %333 = vst.msk [vmem:[#allocation3 + $0x8] sm:$0xff] %vm133, %v331
    %v334 = vld [vmem:[#allocation4] sm:$0xff]
    %v335 = vld [vmem:[#allocation4 + $0x8] sm:$0xff]
    %v336 = vld [vmem:[#allocation14] sm:$0xff]
    %v337 = vld [vmem:[#allocation14 + $0x8] sm:$0xff]
    %v338 = vld [vmem:[#allocation14 + $0x10] sm:$0xff]
    %v339 = vld [vmem:[#allocation14 + $0x18] sm:$0xff]
    %v341 = vsel %vm133, %v125, 0
    %v344 = vsel %vm133, %v126, 0
    %v347 = vsel %vm133, %v336, 0
    %v350 = vsel %vm133, %v337, 0
    %v353 = vsel %vm133, %v338, 0
    %v356 = vsel %vm133, %v339, 0
    %358 = vmatprep.subr.mxu0 0.0
    %359 = vmatpush1.xpose.msra.mxu0 0.0
    %360 = vmatprep.subr.mxu0 0.0
    %361 = vmatpush1.xpose.msra.mxu0 0.0
    %362 = vmatprep.subr.mxu0 0.0
    %363 = vmatpush1.xpose.msra.mxu0 0.0
    %364 = vmatprep.subr.mxu0 0.0
    %365 = vmatpush1.xpose.msra.mxu0 0.0
    %366 = vmatprep.subr.mxu0 0.0
    %367 = vmatpush1.xpose.msra.mxu0 0.0
    %368 = vmatprep.subr.mxu0 0.0
    %369 = vmatpush1.xpose.msra.mxu0 0.0
    %370 = vmatprep.subr.mxu0 0.0
    %371 = vmatpush1.xpose.msra.mxu0 0.0
    %372 = vmatprep.subr.mxu0 0.0
    %373 = vmatpush1.xpose.msra.mxu0 0.0
    %374 = vmatprep.subr.mxu0 0.0
    %375 = vmatpush1.xpose.msra.mxu0 0.0
    %376 = vmatprep.subr.mxu0 0.0
    %377 = vmatpush1.xpose.msra.mxu0 0.0
    %378 = vmatprep.subr.mxu0 0.0
    %379 = vmatpush1.xpose.msra.mxu0 0.0
    %380 = vmatprep.subr.mxu0 0.0
    %381 = vmatpush1.xpose.msra.mxu0 0.0
    %382 = vmatprep.subr.mxu0 0.0
    %383 = vmatpush1.xpose.msra.mxu0 %v356
    %384 = vmatprep.subr.mxu0 0.0
    %385 = vmatpush1.xpose.msra.mxu0 %v353
    %386 = vmatprep.subr.mxu0 0.0
    %387 = vmatpush1.xpose.msra.mxu0 %v350
    %388 = vmatprep.subr.mxu0 0.0
    %389 = vmatpush1.xpose.msra.mxu0 %v347
    %390 = vmatprep.subr.mxu0 0.0
    %391 = vmatpush2.xpose.msra.mxu0 0.0
    %392 = vmatprep.subr.mxu0 0.0
    %393 = vmatpush2.xpose.msra.mxu0 0.0
    %394 = vmatprep.subr.mxu0 0.0
    %395 = vmatpush2.xpose.msra.mxu0 0.0
    %396 = vmatprep.subr.mxu0 0.0
    %397 = vmatpush2.xpose.msra.mxu0 0.0
    %398 = vmatprep.subr.mxu0 0.0
    %399 = vmatpush2.xpose.msra.mxu0 0.0
    %400 = vmatprep.subr.mxu0 0.0
    %401 = vmatpush2.xpose.msra.mxu0 0.0
    %402 = vmatprep.subr.mxu0 0.0
    %403 = vmatpush2.xpose.msra.mxu0 0.0
    %404 = vmatprep.subr.mxu0 0.0
    %405 = vmatpush2.xpose.msra.mxu0 0.0
    %406 = vmatprep.subr.mxu0 0.0
    %407 = vmatpush2.xpose.msra.mxu0 0.0
    %408 = vmatprep.subr.mxu0 0.0
    %409 = vmatpush2.xpose.msra.mxu0 0.0
    %410 = vmatprep.subr.mxu0 0.0
    %411 = vmatpush2.xpose.msra.mxu0 0.0
    %412 = vmatprep.subr.mxu0 0.0
    %413 = vmatpush2.xpose.msra.mxu0 0.0
    %414 = vmatprep.subr.mxu0 0.0
    %415 = vmatpush2.xpose.msra.mxu0 0.0
    %416 = vmatprep.subr.mxu0 0.0
    %417 = vmatpush2.xpose.msra.mxu0 0.0
    %418 = vmatprep.subr.mxu0 0.0
    %419 = vmatpush2.xpose.msra.mxu0 0.0
    %420 = vmatprep.subr.mxu0 0.0
    %421 = vmatpush2.xpose.msra.mxu0 0.0
    %422 = vmatprep.mubr.f32.mxu0 0.0
    %423 = vmatmul.mubr.f32.gmra.mxu0 %v341
    %v424 = vpop.f32.mrf.mxu0
    %v425 = vadd.f32 0.0, %v424
    %v426 = vpop.f32.mrf.mxu0
    %427 = vmatprep.mubr.f32.mxu0 0.0
    %428 = vmatmul.mubr.f32.gmra.mxu0 %v344
    %v429 = vpop.f32.mrf.mxu0
    %v430 = vadd.f32 0.0, %v429
    %v431 = vpop.f32.mrf.mxu0
    %432 = vdwg.mxu0
    %v433 = vadd.f32 %v334, %v425
    %v434 = vadd.f32 %v335, %v430
    %435 = vst.msk [vmem:[#allocation4] sm:$0xff] %vm133, %v433
    %436 = vst.msk [vmem:[#allocation4 + $0x8] sm:$0xff] %vm133, %v434
    // Predicated region
    $region54: #{tpu_custom_call.1} parent=1 // pred_check
      %p437 = pneg %p110
    $region55: #{tpu_custom_call.1} parent=1 // pred_check_branch
      %439 = sbr.rel (%p437) target = $region57
    $region56: #{tpu_custom_call.1} parent=1 // pred_region
      %v440 = vld [vmem:[#allocation2] sm:$0xff]
      %v441 = vld [vmem:[#allocation2 + $0x8] sm:$0xff]
      %442 = vst.msk [vmem:[#allocation16] sm:$0xff] %vm133, %v440
      %443 = vst.msk [vmem:[#allocation16 + $0x8] sm:$0xff] %vm133, %v441
      %v444 = vld [vmem:[#allocation3] sm:$0xff]
      %v445 = vld [vmem:[#allocation3 + $0x8] sm:$0xff]
      %446 = vst.msk [vmem:[#allocation17] sm:$0xff] %vm133, %v444
      %447 = vst.msk [vmem:[#allocation17 + $0x8] sm:$0xff] %vm133, %v445
      %v448 = vld [vmem:[#allocation4] sm:$0xff]
      %v449 = vld [vmem:[#allocation4 + $0x8] sm:$0xff]
      %450 = vst.msk [vmem:[#allocation19] sm:$0xff] %vm133, %v448
      %451 = vst.msk [vmem:[#allocation19 + $0x8] sm:$0xff] %vm133, %v449
    $region57: #{tpu_custom_call.1} parent=1 // pred_fallthru
      _
    // Predicated region
    $region58: #{tpu_custom_call.1} parent=1 // pred_check
      _
    $region59: #{tpu_custom_call.1} parent=1 // pred_check_branch
      %453 = sbr.rel (0) target = $region61
    $region60: #{tpu_custom_call.1} parent=1 // pred_region
      %s455 = ssub.s32 256, 256
      %456 = vsyncadd [#allocation7], %s455
      %s457 = sshll.u32 [#allocation16], 4
      %s458 = int_to_ptr.vmem [resolvable:$true] %s457
      %463 = dma.vmem_to_hbm [thread:$0]  %s458, 256, %s6, [#allocation7], 128, 128, 8
    $region61: #{tpu_custom_call.1} parent=1 // pred_fallthru
      _
    // Predicated region
    $region62: #{tpu_custom_call.1} parent=1 // pred_check
      _
    $region63: #{tpu_custom_call.1} parent=1 // pred_check_branch
      %465 = sbr.rel (0) target = $region65
    $region64: #{tpu_custom_call.1} parent=1 // pred_region
      %s467 = ssub.s32 256, 256
      %468 = vsyncadd [#allocation18], %s467
      %s469 = sshll.u32 [#allocation17], 4
      %s470 = int_to_ptr.vmem [resolvable:$true] %s469
      %475 = dma.vmem_to_hbm [thread:$0]  %s470, 256, %s7, [#allocation18], 128, 128, 8
    $region65: #{tpu_custom_call.1} parent=1 // pred_fallthru
      _
    // Predicated region
    $region66: #{tpu_custom_call.1} parent=1 // pred_check
      _
    $region67: #{tpu_custom_call.1} parent=1 // pred_check_branch
      %477 = sbr.rel (0) target = $region69
    $region68: #{tpu_custom_call.1} parent=1 // pred_region
      %s479 = ssub.s32 256, 256
      %480 = vsyncadd [#allocation18], %s479
      %s481 = sshll.u32 [#allocation19], 4
      %s482 = int_to_ptr.vmem [resolvable:$true] %s481
      %487 = dma.vmem_to_hbm [thread:$0]  %s482, 256, %s8, [#allocation18], 128, 128, 8
    $region69: #{tpu_custom_call.1} parent=1 // pred_fallthru
      _
    // Predicated region
    $region70: #{tpu_custom_call.1} parent=1 // pred_check
      _
    $region71: #{tpu_custom_call.1} parent=1 // pred_check_branch
      %489 = sbr.rel (0) target = $region73
    $region72: #{tpu_custom_call.1} parent=1 // pred_region
      %490 = dma.done [#allocation7], 256
    $region73: #{tpu_custom_call.1} parent=1 // pred_fallthru
      _
    // Predicated region
    $region74: #{tpu_custom_call.1} parent=1 // pred_check
      _
    $region75: #{tpu_custom_call.1} parent=1 // pred_check_branch
      %492 = sbr.rel (0) target = $region77
    $region76: #{tpu_custom_call.1} parent=1 // pred_region
      %493 = dma.done [#allocation18], 256
    $region77: #{tpu_custom_call.1} parent=1 // pred_fallthru
      _
    // Predicated region
    $region78: #{tpu_custom_call.1} parent=1 // pred_check
      _
    $region79: #{tpu_custom_call.1} parent=1 // pred_check_branch
      %495 = sbr.rel (0) target = $region81
    $region80: #{tpu_custom_call.1} parent=1 // pred_region
      %496 = dma.done [#allocation18], 256
    $region81: #{tpu_custom_call.1} parent=1 // pred_fallthru
      _
    %497 = vsyncpa [#allocation6], 1
    %498 = vsyncpa [#allocation9], 1
    %499 = vsyncpa [#allocation12], 1
    %500 = vsyncpa [#allocation15], 1
    %501 = vsyncpa [#allocation7], 1
    %502 = vsyncpa [#allocation18], 1

</llo_original>
